<compile_context>
chip_gen: v7x
topology: tpu7x:2x2x1
jax: 0.10.0
libtpu: 0.0.40
codegen_flags: <defaults>
</compile_context>

<pallas_src>
import math

import jax
import jax.numpy as jnp
from jax.experimental import pallas as pl
from jax.experimental.pallas import tpu as pltpu


# Cody-Waite split of pi/2 (2x the classic Cephes sinf pi/4 split) plus the
# Cephes single-precision sin/cos minimax polynomial coefficients (|r|<=pi/4).
_TWO_OVER_PI = 0.636619772367581343
_PIO2_1 = 1.5703125                    # few mantissa bits -> kf*_PIO2_1 exact
_PIO2_2 = 4.837512969970703125e-4
_PIO2_3 = 7.54978995489188216e-8
_SIN_C0, _SIN_C1, _SIN_C2 = -1.9515295891e-4, 8.3321608736e-3, -1.6666654611e-1
_COS_C0, _COS_C1, _COS_C2 = (2.443315711809948e-5,
                             -1.388731625493765e-3,
                             4.166664568298827e-2)


def _sinusoidal_kernel(time_ref, freqs_ref, out_ref):
    """time_ref: (TB, 1) f32; freqs_ref: (1, half_dim) f32; out_ref: (TB, dim) f32."""
    half_dim = freqs_ref.shape[1]
    x = time_ref[...] * freqs_ref[...]                    # (TB, half_dim) f32

    # --- shared range reduction:  x = k*(pi/2) + r,  r in [-pi/4, pi/4] ------
    kf = jnp.floor(x * _TWO_OVER_PI + 0.5)                # nearest integer multiple
    k = kf.astype(jnp.int32)
    r = x - kf * _PIO2_1
    r = r - kf * _PIO2_2
    r = r - kf * _PIO2_3
    z = r * r

    # --- sin / cos polynomials on the *same* reduced argument -----------------
    ps = ((_SIN_C0 * z + _SIN_C1) * z + _SIN_C2) * z * r + r          # sin(r)
    pc = ((_COS_C0 * z + _COS_C1) * z + _COS_C2) * z * z - 0.5 * z + 1.0  # cos(r)

    # --- quadrant fix-up (cheap VPU selects) ----------------------------------
    # sin(x) = [ ps,  pc, -ps, -pc][k % 4]
    # cos(x) = [ pc, -ps, -pc,  ps][k % 4]
    n = k & 3
    odd = (n & 1) == 1
    sin_x = jnp.where(odd, pc, ps)
    cos_x = jnp.where(odd, ps, pc)
    sin_x = jnp.where((n & 2) == 2, -sin_x, sin_x)
    cos_x = jnp.where((n == 1) | (n == 2), -cos_x, cos_x)

    # Direct slice stores (lane-aligned & unmasked whenever half_dim % 128 == 0).
    out_ref[:, :half_dim] = sin_x
    out_ref[:, half_dim:] = cos_x


def _round_up(x: int, m: int) -> int:
    return ((x + m - 1) // m) * m


def sinusoidal_position_embeddings(time: jax.Array, dim: int) -> jax.Array:
    """time: (B,) f32 -> (B, dim) f32, identical semantics to the torch module."""
    assert dim % 2 == 0 and dim >= 4, "dim must be even and >= 4 (half_dim - 1 > 0)"
    half_dim = dim // 2

    batch = time.shape[0]
    time2d = time.astype(jnp.float32).reshape(batch, 1)   # (B, 1)

    # Frequency table precomputed once in the wrapper (hoisted out of kernel).
    scale = math.log(10000.0) / (half_dim - 1)
    freqs = jnp.exp(
        jnp.arange(half_dim, dtype=jnp.float32) * (-scale)
    ).reshape(1, half_dim)

    # --- tile sizing: pick tb by bytes (~2 MiB output tile), not rows ---------
    # 2x double-buffered output tile + time tile stays ~4-5 MiB: far below the
    # 32 MiB scoped VMEM default on v5e/v6e/v7x, so no vmem_limit override.
    target_tile_bytes = 2 << 20
    rows_for_target = max(1, target_tile_bytes // (4 * dim))
    tb = max(8, min(_round_up(batch, 8), _round_up(rows_for_target, 8)))
    num_blocks = -(-batch // tb)
    # v7x megacore: if the problem is big enough to matter but would be a single
    # block, halve the tile so the "parallel" axis can shard across both TCs.
    if num_blocks == 1 and batch * dim * 4 >= (1 << 20):
        tb = max(8, _round_up(-(-batch // 2), 8))
        num_blocks = -(-batch // tb)

    out = pl.pallas_call(
        _sinusoidal_kernel,
        out_shape=jax.ShapeDtypeStruct((batch, dim), jnp.float32),
        grid=(num_blocks,),
        in_specs=[
            pl.BlockSpec((tb, 1), lambda i: (i, 0)),          # time tile
            pl.BlockSpec((1, half_dim), lambda i: (0, 0)),    # shared freqs table
        ],
        out_specs=pl.BlockSpec((tb, dim), lambda i: (i, 0)),
        compiler_params=pltpu.CompilerParams(
            dimension_semantics=("parallel",),
        ),
    )(time2d, freqs)
    # No pad / slice: Pallas masks the partial final block's writes itself.
    return out


def _reference(time: jax.Array, dim: int) -> jax.Array:
    """Plain-JAX reference mirroring the torch forward pass."""
    half_dim = dim // 2
    scale = math.log(10000.0) / (half_dim - 1)
    freqs = jnp.exp(jnp.arange(half_dim, dtype=jnp.float32) * (-scale))
    args = time.astype(jnp.float32)[:, None] * freqs[None, :]
    return jnp.concatenate([jnp.sin(args), jnp.cos(args)], axis=-1)


if __name__ == "__main__":
    key = jax.random.PRNGKey(0)
    batch, dim = 8, 32

    # Synthetic "noise level / timestep" inputs, deterministic.
    time = jax.random.uniform(
        key, (batch,), dtype=jnp.float32, minval=0.0, maxval=100.0
    )

    out = sinusoidal_position_embeddings(time, dim)
    out = jax.block_until_ready(out)

    ref = _reference(time, dim)
    assert out.shape == (batch, dim)
    assert out.dtype == jnp.float32
    assert jnp.allclose(out, ref, atol=1e-5, rtol=1e-5), "mismatch vs reference"

    # Batch size that is not a multiple of the tile (exercises the masked
    # partial final block instead of the old pad/slice path).
    time2 = jax.random.uniform(
        jax.random.PRNGKey(1), (13,), dtype=jnp.float32, minval=0.0, maxval=100.0
    )
    out2 = jax.block_until_ready(sinusoidal_position_embeddings(time2, dim))
    assert out2.shape == (13, dim)
    assert jnp.allclose(out2, _reference(time2, dim), atol=1e-5, rtol=1e-5)

    print("KERNEL_OK")
</pallas_src>

<mosaic_0001>
module attributes {stable_mosaic.version = 11 : i64} {
  func.func @_sinusoidal_kernel(%arg0: i32, %arg1: memref<8x1xf32, #tpu.memory_space<vmem>>, %arg2: memref<1x16xf32, #tpu.memory_space<vmem>>, %arg3: memref<8x32xf32, #tpu.memory_space<vmem>>) attributes {dimension_semantics = [#tpu.dimension_semantics<parallel>], iteration_bounds = array<i64: 1>, scalar_prefetch = 0 : i64, scratch_operands = 0 : i64, tpu.core_type = #tpu.core_type<tc>, window_params = [{transform_indices = @transform_0, window_bounds = array<i64: 8, 1>}, {pipeline_mode = #tpu.pipeline_mode<synchronous>, transform_indices = @transform_1, window_bounds = array<i64: 1, 16>}, {transform_indices = @transform_2, window_bounds = array<i64: 8, 32>}]} {
    %c0 = arith.constant 0 : index
    %c0_0 = arith.constant 0 : index
    %0 = vector.load %arg1[%c0, %c0_0] : memref<8x1xf32, #tpu.memory_space<vmem>>, vector<8x1xf32>
    %c0_1 = arith.constant 0 : index
    %c0_2 = arith.constant 0 : index
    %1 = vector.load %arg2[%c0_1, %c0_2] : memref<1x16xf32, #tpu.memory_space<vmem>>, vector<1x16xf32>
    %2 = vector.broadcast %0 : vector<8x1xf32> to vector<8x16xf32>
    %3 = vector.broadcast %1 : vector<1x16xf32> to vector<8x16xf32>
    %4 = arith.mulf %2, %3 : vector<8x16xf32>
    %cst = arith.constant 0.636619746 : f32
    %5 = vector.broadcast %cst : f32 to vector<8x16xf32>
    %6 = arith.mulf %4, %5 : vector<8x16xf32>
    %cst_3 = arith.constant 5.000000e-01 : f32
    %7 = vector.broadcast %cst_3 : f32 to vector<8x16xf32>
    %8 = arith.addf %6, %7 : vector<8x16xf32>
    %9 = math.floor %8 : vector<8x16xf32>
    %10 = arith.fptosi %9 : vector<8x16xf32> to vector<8x16xi32>
    %cst_4 = arith.constant 1.5703125 : f32
    %11 = vector.broadcast %cst_4 : f32 to vector<8x16xf32>
    %12 = arith.mulf %9, %11 : vector<8x16xf32>
    %13 = arith.subf %4, %12 : vector<8x16xf32>
    %cst_5 = arith.constant 4.83751297E-4 : f32
    %14 = vector.broadcast %cst_5 : f32 to vector<8x16xf32>
    %15 = arith.mulf %9, %14 : vector<8x16xf32>
    %16 = arith.subf %13, %15 : vector<8x16xf32>
    %cst_6 = arith.constant 7.549790e-08 : f32
    %17 = vector.broadcast %cst_6 : f32 to vector<8x16xf32>
    %18 = arith.mulf %9, %17 : vector<8x16xf32>
    %19 = arith.subf %16, %18 : vector<8x16xf32>
    %20 = arith.mulf %19, %19 : vector<8x16xf32>
    %cst_7 = arith.constant -1.95152956E-4 : f32
    %21 = vector.broadcast %cst_7 : f32 to vector<8x16xf32>
    %22 = arith.mulf %21, %20 : vector<8x16xf32>
    %cst_8 = arith.constant 0.00833216123 : f32
    %23 = vector.broadcast %cst_8 : f32 to vector<8x16xf32>
    %24 = arith.addf %22, %23 : vector<8x16xf32>
    %25 = arith.mulf %24, %20 : vector<8x16xf32>
    %cst_9 = arith.constant -0.166666552 : f32
    %26 = vector.broadcast %cst_9 : f32 to vector<8x16xf32>
    %27 = arith.addf %25, %26 : vector<8x16xf32>
    %28 = arith.mulf %27, %20 : vector<8x16xf32>
    %29 = arith.mulf %28, %19 : vector<8x16xf32>
    %30 = arith.addf %29, %19 : vector<8x16xf32>
    %cst_10 = arith.constant 2.44331568E-5 : f32
    %31 = vector.broadcast %cst_10 : f32 to vector<8x16xf32>
    %32 = arith.mulf %31, %20 : vector<8x16xf32>
    %cst_11 = arith.constant -0.00138873165 : f32
    %33 = vector.broadcast %cst_11 : f32 to vector<8x16xf32>
    %34 = arith.addf %32, %33 : vector<8x16xf32>
    %35 = arith.mulf %34, %20 : vector<8x16xf32>
    %cst_12 = arith.constant 0.0416666456 : f32
    %36 = vector.broadcast %cst_12 : f32 to vector<8x16xf32>
    %37 = arith.addf %35, %36 : vector<8x16xf32>
    %38 = arith.mulf %37, %20 : vector<8x16xf32>
    %39 = arith.mulf %38, %20 : vector<8x16xf32>
    %cst_13 = arith.constant 5.000000e-01 : f32
    %40 = vector.broadcast %cst_13 : f32 to vector<8x16xf32>
    %41 = arith.mulf %40, %20 : vector<8x16xf32>
    %42 = arith.subf %39, %41 : vector<8x16xf32>
    %cst_14 = arith.constant 1.000000e+00 : f32
    %43 = vector.broadcast %cst_14 : f32 to vector<8x16xf32>
    %44 = arith.addf %42, %43 : vector<8x16xf32>
    %c3_i32 = arith.constant 3 : i32
    %45 = vector.broadcast %c3_i32 : i32 to vector<8x16xi32>
    %46 = arith.andi %10, %45 : vector<8x16xi32>
    %c1_i32 = arith.constant 1 : i32
    %47 = vector.broadcast %c1_i32 : i32 to vector<8x16xi32>
    %48 = arith.andi %46, %47 : vector<8x16xi32>
    %c1_i32_15 = arith.constant 1 : i32
    %49 = vector.broadcast %c1_i32_15 : i32 to vector<8x16xi32>
    %50 = arith.cmpi eq, %48, %49 : vector<8x16xi32>
    %51 = arith.select %50, %44, %30 : vector<8x16xi1>, vector<8x16xf32>
    %52 = arith.select %50, %30, %44 : vector<8x16xi1>, vector<8x16xf32>
    %c2_i32 = arith.constant 2 : i32
    %53 = vector.broadcast %c2_i32 : i32 to vector<8x16xi32>
    %54 = arith.andi %46, %53 : vector<8x16xi32>
    %c2_i32_16 = arith.constant 2 : i32
    %55 = vector.broadcast %c2_i32_16 : i32 to vector<8x16xi32>
    %56 = arith.cmpi eq, %54, %55 : vector<8x16xi32>
    %cst_17 = arith.constant 0.000000e+00 : f32
    %57 = vector.broadcast %cst_17 : f32 to vector<8x16xf32>
    %58 = arith.subf %57, %51 : vector<8x16xf32>
    %59 = arith.select %56, %58, %51 : vector<8x16xi1>, vector<8x16xf32>
    %c1_i32_18 = arith.constant 1 : i32
    %60 = vector.broadcast %c1_i32_18 : i32 to vector<8x16xi32>
    %61 = arith.cmpi eq, %46, %60 : vector<8x16xi32>
    %c2_i32_19 = arith.constant 2 : i32
    %62 = vector.broadcast %c2_i32_19 : i32 to vector<8x16xi32>
    %63 = arith.cmpi eq, %46, %62 : vector<8x16xi32>
    %64 = arith.ori %61, %63 : vector<8x16xi1>
    %cst_20 = arith.constant 0.000000e+00 : f32
    %65 = vector.broadcast %cst_20 : f32 to vector<8x16xf32>
    %66 = arith.subf %65, %52 : vector<8x16xf32>
    %67 = arith.select %64, %66, %52 : vector<8x16xi1>, vector<8x16xf32>
    %c0_21 = arith.constant 0 : index
    %c0_22 = arith.constant 0 : index
    %68 = vector.load %arg3[%c0_21, %c0_22] : memref<8x32xf32, #tpu.memory_space<vmem>>, vector<8x16xf32>
    tpu.vector_store %arg3[%c0_21, %c0_22], %59 {strides = array<i32>} : memref<8x32xf32, #tpu.memory_space<vmem>>, vector<8x16xf32>,
    %c0_23 = arith.constant 0 : index
    %c16 = arith.constant 16 : index
    %69 = vector.load %arg3[%c0_23, %c16] : memref<8x32xf32, #tpu.memory_space<vmem>>, vector<8x16xf32>
    tpu.vector_store %arg3[%c0_23, %c16], %67 {strides = array<i32>} : memref<8x32xf32, #tpu.memory_space<vmem>>, vector<8x16xf32>,
    return
  }
  func.func @transform_0(%arg0: i32) -> (i32, i32) {
    %c0_i32 = arith.constant 0 : i32
    %c0_i32_0 = arith.constant 0 : i32
    return %arg0, %c0_i32 : i32, i32
  }
  func.func @transform_1(%arg0: i32) -> (i32, i32) {
    %c0_i32 = arith.constant 0 : i32
    %c0_i32_0 = arith.constant 0 : i32
    %c0_i32_1 = arith.constant 0 : i32
    return %c0_i32, %c0_i32_0 : i32, i32
  }
  func.func @transform_2(%arg0: i32) -> (i32, i32) {
    %c0_i32 = arith.constant 0 : i32
    %c0_i32_0 = arith.constant 0 : i32
    return %arg0, %c0_i32 : i32, i32
  }
}

</mosaic_0001>

<llo_original>
// kernel: tpu_custom_call.1
$region0: #{tpu_custom_call.1}
  #allocation0 [shape = 'u32[]', space=smem, size = 0x4, offset = 0x4, fixed_abs, tag = 'smem constant byte address 0x4 - core index']
  #allocation1 [shape = 'u32[144,128]{1,0:T(1,128)}', space=vmem, size = 0x12000, scoped, tag = 'internal scratch']
  %s0 = inlined_call_operand.vmem [shape: f32[8,1], index: 0, kind: input, shape index: {}]
  %s1 = inlined_call_operand.vmem [shape: f32[1,16], index: 1, kind: input, shape index: {}]
  %s2 = inlined_call_operand.hbm [shape: f32[8,32], index: 2, kind: output, shape index: {}]
  %s3 = sld [smem:[#allocation0]]
  $region18: #{tpu_custom_call.1} parent=0
    _
  %s5 = ssub.s32 1, %s3
  %s6 = scalar_select 0, %s5, %s3
  $region1: #{tpu_custom_call.1} parent=0
    #allocation2 [shape = 'u8[4096]{0}', space=vmem, size = 0x1000, scoped, tag = 'output window, operand 0, single buffered']
    #allocation3 [shape = 's32[1]{0}', space=sflag, size = 0x4, scoped, tag = 'scoped memory for tpu_custom_call.1']
    %7 = vsyncpa [#allocation3], 0
    // Predicated region
    $region2: #{tpu_custom_call.1} parent=1 // pred_check
      _
    $region3: #{tpu_custom_call.1} parent=1 // pred_check_branch
      %9 = sbr.rel (0) target = $region5
    $region4: #{tpu_custom_call.1} parent=1 // pred_region
      _
    $region5: #{tpu_custom_call.1} parent=1 // pred_fallthru
      _
    // Predicated region
    $region6: #{tpu_custom_call.1} parent=1 // pred_check
      _
    $region7: #{tpu_custom_call.1} parent=1 // pred_check_branch
      %11 = sbr.rel (0) target = $region9
    $region8: #{tpu_custom_call.1} parent=1 // pred_region
      _
    $region9: #{tpu_custom_call.1} parent=1 // pred_fallthru
      _
    %v12 = vld [vmem:[%s0] sm:$0xff]
    %v13 = vld [vmem:[%s1] sm:$0x1]
    %15 = vset.pattern.permute.xlu0 0
    %16 = vperm.xlu0 %15, %v12
    %v17 = vpop.permute.xlu0 %16
    %v20 = vlaneseq
    %v21 = vshrl.u32 %v20, 7
    %v22 = vsub.s32 0, %v21
    %v23 = vrot.slane %v13, %v22
    %v25 = vmul.f32 %v17, %v23
    %v26 = vmul.f32 %v25, 0.63661975
    %v27 = vadd.f32 %v26, 0.5
    %v28 = vfloor.f32 %v27
    %v29 = vcvt.f32.s32.to.zero.pseudo %v28
    %v30 = vmul.f32 %v28, 1.5703125
    %v31 = vsub.f32 %v25, %v30
    %v32 = vmul.f32 %v28, 0.0004837513
    %v33 = vsub.f32 %v31, %v32
    %v34 = vmul.f32 %v28, 7.54979e-08
    %v35 = vsub.f32 %v33, %v34
    %v36 = vmul.f32 %v35, %v35
    %v37 = vmul.f32 %v36, -0.00019515296
    %v38 = vadd.f32 %v37, 0.008332161
    %v39 = vmul.f32 %v38, %v36
    %v40 = vadd.f32 %v39, -0.16666655
    %v41 = vmul.f32 %v40, %v36
    %v42 = vmul.f32 %v41, %v35
    %v43 = vadd.f32 %v42, %v35
    %v44 = vmul.f32 %v36, 2.4433157e-05
    %v45 = vadd.f32 %v44, -0.0013887316
    %v46 = vmul.f32 %v45, %v36
    %v47 = vadd.f32 %v46, 0.041666646
    %v48 = vmul.f32 %v47, %v36
    %v49 = vmul.f32 %v48, %v36
    %v50 = vmul.f32 %v36, 0.5
    %v51 = vsub.f32 %v49, %v50
    %v52 = vadd.f32 %v51, 1.0
    %v53 = vand.u32 %v29, 3
    %v54 = vand.u32 %v53, 1
    %vm55 = vcmp.eq.s32.totalorder %v54, 1
    %v56 = vsel %vm55, %v52, %v43
    %v57 = vsel %vm55, %v43, %v52
    %v58 = vand.u32 %v53, 2
    %vm59 = vcmp.eq.s32.totalorder %v58, 2
    %v60 = vsub.f32 0.0, %v56
    %v61 = vsel %vm59, %v60, %v56
    %vm62 = vcmp.eq.s32.totalorder %v53, 1
    %vm63 = vcmp.eq.s32.totalorder %v53, 2
    %vm64 = vmor %vm62, %vm63
    %v65 = vsub.f32 0.0, %v57
    %v66 = vsel %vm64, %v65, %v57
    %vm67 = vcmask 130048
    %68 = vst.msk [vmem:[#allocation2] sm:$0xff] %vm67, %v61
    %70 = vrot.lane.b32.xlu0 %v66, 16
    %v71 = vpop.permute.xlu0 %70
    %vm73 = vcmask 261248
    %74 = vst.msk [vmem:[#allocation2] sm:$0xff] %vm73, %v71
    // Predicated region
    $region10: #{tpu_custom_call.1} parent=1 // pred_check
      _
    $region11: #{tpu_custom_call.1} parent=1 // pred_check_branch
      %76 = sbr.rel (0) target = $region13
    $region12: #{tpu_custom_call.1} parent=1 // pred_region
      %s78 = ssub.s32 128, 128
      %79 = vsyncadd [#allocation3], %s78
      %s81 = sshll.u32 [#allocation2], 4
      %s82 = int_to_ptr.vmem [resolvable:$true] %s81
      %84 = dma.vmem_to_hbm [thread:$0]  %s82, 128, %s2, [#allocation3]
    $region13: #{tpu_custom_call.1} parent=1 // pred_fallthru
      _
    // Predicated region
    $region14: #{tpu_custom_call.1} parent=1 // pred_check
      _
    $region15: #{tpu_custom_call.1} parent=1 // pred_check_branch
      %86 = sbr.rel (0) target = $region17
    $region16: #{tpu_custom_call.1} parent=1 // pred_region
      %87 = dma.done [#allocation3], 128
    $region17: #{tpu_custom_call.1} parent=1 // pred_fallthru
      _
    %88 = vsyncpa [#allocation3], 1

</llo_original>
